<compile_context>
chip_gen: v7x
topology: tpu7x:2x2x1
jax: 0.10.0
libtpu: 0.0.40
codegen_flags: <defaults>
</compile_context>

<pallas_src>
import functools

import jax
import jax.numpy as jnp
from jax.experimental import pallas as pl
from jax.experimental.pallas import tpu as pltpu


def _round_up(x, m):
    return ((x + m - 1) // m) * m


def _vae_head_kernel(x_ref, wm_ref, wv_ref, eps_ref,
                     slab_ref, kl_ref,
                     *, pad, kl_scale, epsilon_std):
    x = x_ref[...]                                            # (B, 2H+1) f32

    # Two bias-augmented block-diagonal matmuls on the MXU produce z_mean and
    # the pre-abs var directly in the concatenated [ft | rxn] latent layout.
    z_mean = jnp.dot(x, wm_ref[...],
                     preferred_element_type=jnp.float32)      # (B, 2L)
    z_log_var = -jnp.abs(
        jnp.dot(x, wv_ref[...],
                preferred_element_type=jnp.float32))          # (B, 2L)

    # Single EUP pass: e = exp(z_log_var / 2); exp(z_log_var) == e * e.
    e = jnp.exp(z_log_var * 0.5)

    # Reparameterization over the full concatenated latent.
    vec = z_mean + e * (eps_ref[...] * epsilon_std)           # (B, 2L)

    # KL divergence; -0.5 / batch folded into kl_scale.  Scalar -> SMEM.
    kl_ref[0] = kl_scale * jnp.sum(1.0 + z_log_var - z_mean * z_mean - e * e)

    # One lane-dense output slab: [z_mean | z_log_var | vec | zero-pad].
    parts = [z_mean, z_log_var, vec]
    if pad:
        parts.append(jnp.zeros((z_mean.shape[0], pad), jnp.float32))
    slab_ref[...] = jnp.concatenate(parts, axis=1)


def pack_vae_head_params(params):
    """Pack the four (H, L) Linear layers into two bias-augmented
    block-diagonal weights of shape (2H+1, 2L).  Do this once / offline."""
    H, L = params["w_ft_mean"].shape
    zero = jnp.zeros((H, L), jnp.float32)

    def blockdiag_aug(w_ft, w_rxn, b_ft, b_rxn):
        top = jnp.concatenate([w_ft, zero], axis=1)           # (H, 2L)
        bot = jnp.concatenate([zero, w_rxn], axis=1)          # (H, 2L)
        bias = jnp.concatenate([b_ft, b_rxn], axis=1)         # (1, 2L)
        return jnp.concatenate([top, bot, bias], axis=0)      # (2H+1, 2L)

    return {
        "w_mean": blockdiag_aug(params["w_ft_mean"], params["w_rxn_mean"],
                                params["b_ft_mean"], params["b_rxn_mean"]),
        "w_var": blockdiag_aug(params["w_ft_var"], params["w_rxn_var"],
                               params["b_ft_var"], params["b_rxn_var"]),
    }


def ftrxnvae_head(root_vecs, root_vecs_rxn, params, eps_ft, eps_rxn,
                  epsilon_std=0.1, packed=None):
    """Pallas implementation of the FTRXNVAE latent head.

    Returns (z_mean, z_log_var, ft_vec, rxn_vec, kl_loss)."""
    B, H = root_vecs.shape
    L = params["w_ft_mean"].shape[1]
    L2 = 2 * L
    slab_cols = _round_up(3 * L2, 128)     # lane-dense output width
    pad = slab_cols - 3 * L2

    if packed is None:
        packed = pack_vae_head_params(params)

    # Pack activations: lhs = [ft | rxn | 1] (bias rides in the matmul),
    # eps in the concatenated z layout.
    ones = jnp.ones((B, 1), jnp.float32)
    x = jnp.concatenate([root_vecs, root_vecs_rxn, ones], axis=1)   # (B, 2H+1)
    eps = jnp.concatenate([eps_ft, eps_rxn], axis=1)                # (B, 2L)

    kernel = functools.partial(_vae_head_kernel,
                               pad=int(pad),
                               kl_scale=-0.5 / float(B),
                               epsilon_std=float(epsilon_std))

    full = lambda shape: pl.BlockSpec(shape, lambda: tuple(0 for _ in shape))

    slab, kl = pl.pallas_call(
        kernel,
        out_shape=(jax.ShapeDtypeStruct((B, slab_cols), jnp.float32),
                   jax.ShapeDtypeStruct((1,), jnp.float32)),
        grid_spec=pltpu.PrefetchScalarGridSpec(
            num_scalar_prefetch=0,
            grid=(),
            in_specs=[full((B, 2 * H + 1)),
                      full((2 * H + 1, L2)),
                      full((2 * H + 1, L2)),
                      full((B, L2))],
            out_specs=(full((B, slab_cols)),
                       pl.BlockSpec(memory_space=pltpu.MemorySpace.SMEM)),
        ),
        # NOTE (v7x): at B=8 a single TensorCore is the right choice; for large
        # batches add a batch grid axis with dimension_semantics=("parallel",).
    )(x, packed["w_mean"], packed["w_var"], eps)

    # Free XLA slices out of the lane-dense slab.
    z_mean = slab[:, 0:L2]
    z_log_var = slab[:, L2:2 * L2]
    vec = slab[:, 2 * L2:3 * L2]
    ft_vec = vec[:, :L]
    rxn_vec = vec[:, L:]
    return z_mean, z_log_var, ft_vec, rxn_vec, kl[0]


def _reference(root_vecs, root_vecs_rxn, params, eps_ft, eps_rxn,
               epsilon_std=0.1):
    ft_mean = root_vecs @ params["w_ft_mean"] + params["b_ft_mean"]
    ft_lv = -jnp.abs(root_vecs @ params["w_ft_var"] + params["b_ft_var"])
    rxn_mean = root_vecs_rxn @ params["w_rxn_mean"] + params["b_rxn_mean"]
    rxn_lv = -jnp.abs(root_vecs_rxn @ params["w_rxn_var"] + params["b_rxn_var"])
    z_mean = jnp.concatenate([ft_mean, rxn_mean], axis=1)
    z_lv = jnp.concatenate([ft_lv, rxn_lv], axis=1)
    kl = -0.5 * jnp.sum(1.0 + z_lv - z_mean * z_mean
                        - jnp.exp(z_lv)) / root_vecs.shape[0]
    ft_vec = ft_mean + jnp.exp(ft_lv / 2.0) * (eps_ft * epsilon_std)
    rxn_vec = rxn_mean + jnp.exp(rxn_lv / 2.0) * (eps_rxn * epsilon_std)
    return z_mean, z_lv, ft_vec, rxn_vec, kl


if __name__ == "__main__":
    # Small shapes consistent with the module: hidden_size=32, latent_size=16,
    # batch of 8 (ft, rxn) tree pairs whose encoders already produced root vecs.
    B, H, L = 8, 32, 16
    key = jax.random.PRNGKey(0)
    ks = jax.random.split(key, 12)

    root_vecs = jax.random.normal(ks[0], (B, H), jnp.float32)
    root_vecs_rxn = jax.random.normal(ks[1], (B, H), jnp.float32)

    # Deterministic synthetic parameters (nn.Linear(H, L) weights, transposed
    # to (H, L) so the math is x @ W + b).
    scale = 1.0 / jnp.sqrt(jnp.float32(H))
    params = {
        "w_ft_mean": jax.random.normal(ks[2], (H, L), jnp.float32) * scale,
        "b_ft_mean": jax.random.normal(ks[3], (1, L), jnp.float32) * scale,
        "w_ft_var": jax.random.normal(ks[4], (H, L), jnp.float32) * scale,
        "b_ft_var": jax.random.normal(ks[5], (1, L), jnp.float32) * scale,
        "w_rxn_mean": jax.random.normal(ks[6], (H, L), jnp.float32) * scale,
        "b_rxn_mean": jax.random.normal(ks[7], (1, L), jnp.float32) * scale,
        "w_rxn_var": jax.random.normal(ks[8], (H, L), jnp.float32) * scale,
        "b_rxn_var": jax.random.normal(ks[9], (1, L), jnp.float32) * scale,
    }

    # The epsilon ~ N(0,1) draws from torch.randn, generated host-side.
    eps_ft = jax.random.normal(ks[10], (B, L), jnp.float32)
    eps_rxn = jax.random.normal(ks[11], (B, L), jnp.float32)

    packed = pack_vae_head_params(params)   # one-time packing
    outs = ftrxnvae_head(root_vecs, root_vecs_rxn, params, eps_ft, eps_rxn,
                         epsilon_std=0.1, packed=packed)
    outs = jax.block_until_ready(outs)

    refs = _reference(root_vecs, root_vecs_rxn, params, eps_ft, eps_rxn,
                      epsilon_std=0.1)
    for o, r in zip(outs, refs):
        assert jnp.allclose(o, r, atol=1e-5, rtol=1e-4), (o, r)

    print("KERNEL_OK")
</pallas_src>

<mosaic_0001>
module attributes {stable_mosaic.version = 11 : i64} {
  func.func @_vae_head_kernel(%arg0: memref<8x65xf32, #tpu.memory_space<vmem>>, %arg1: memref<65x32xf32, #tpu.memory_space<vmem>>, %arg2: memref<65x32xf32, #tpu.memory_space<vmem>>, %arg3: memref<8x32xf32, #tpu.memory_space<vmem>>, %arg4: memref<8x128xf32, #tpu.memory_space<vmem>>, %arg5: memref<1xf32, #tpu.memory_space<smem>>) attributes {dimension_semantics = [], scalar_prefetch = 0 : i64, scratch_operands = 0 : i64, tpu.core_type = #tpu.core_type<tc>} {
    %c0 = arith.constant 0 : index
    %c0_0 = arith.constant 0 : index
    %0 = vector.load %arg0[%c0, %c0_0] : memref<8x65xf32, #tpu.memory_space<vmem>>, vector<8x65xf32>
    %c0_1 = arith.constant 0 : index
    %c0_2 = arith.constant 0 : index
    %1 = vector.load %arg1[%c0_1, %c0_2] : memref<65x32xf32, #tpu.memory_space<vmem>>, vector<65x32xf32>
    %cst = arith.constant dense<0.000000e+00> : vector<8x32xf32>
    %2 = tpu.matmul %0, %1, %cst {dimension_numbers = #tpu.dot_dimension_numbers<[1], [0], [0], [1], [0, 0, 1, 1], [], []>} : vector<8x65xf32>, vector<65x32xf32>, vector<8x32xf32> -> vector<8x32xf32>
    %c0_3 = arith.constant 0 : index
    %c0_4 = arith.constant 0 : index
    %3 = vector.load %arg2[%c0_3, %c0_4] : memref<65x32xf32, #tpu.memory_space<vmem>>, vector<65x32xf32>
    %cst_5 = arith.constant dense<0.000000e+00> : vector<8x32xf32>
    %4 = tpu.matmul %0, %3, %cst_5 {dimension_numbers = #tpu.dot_dimension_numbers<[1], [0], [0], [1], [0, 0, 1, 1], [], []>} : vector<8x65xf32>, vector<65x32xf32>, vector<8x32xf32> -> vector<8x32xf32>
    %5 = math.absf %4 : vector<8x32xf32>
    %cst_6 = arith.constant 0.000000e+00 : f32
    %6 = vector.broadcast %cst_6 : f32 to vector<8x32xf32>
    %7 = arith.subf %6, %5 : vector<8x32xf32>
    %cst_7 = arith.constant 5.000000e-01 : f32
    %8 = vector.broadcast %cst_7 : f32 to vector<8x32xf32>
    %9 = arith.mulf %7, %8 : vector<8x32xf32>
    %10 = math.exp %9 : vector<8x32xf32>
    %c0_8 = arith.constant 0 : index
    %c0_9 = arith.constant 0 : index
    %11 = vector.load %arg3[%c0_8, %c0_9] : memref<8x32xf32, #tpu.memory_space<vmem>>, vector<8x32xf32>
    %cst_10 = arith.constant 1.000000e-01 : f32
    %12 = vector.broadcast %cst_10 : f32 to vector<8x32xf32>
    %13 = arith.mulf %11, %12 : vector<8x32xf32>
    %14 = arith.mulf %10, %13 : vector<8x32xf32>
    %15 = arith.addf %2, %14 : vector<8x32xf32>
    %cst_11 = arith.constant 1.000000e+00 : f32
    %16 = vector.broadcast %cst_11 : f32 to vector<8x32xf32>
    %17 = arith.addf %16, %7 : vector<8x32xf32>
    %18 = arith.mulf %2, %2 : vector<8x32xf32>
    %19 = arith.subf %17, %18 : vector<8x32xf32>
    %20 = arith.mulf %10, %10 : vector<8x32xf32>
    %21 = arith.subf %19, %20 : vector<8x32xf32>
    %22 = vector.shape_cast %21 : vector<8x32xf32> to vector<1x8x32xf32>
    %cst_12 = arith.constant dense<0.000000e+00> : vector<1xf32>
    %23 = vector.multi_reduction <add>, %22, %cst_12 [1, 2] : vector<1x8x32xf32> to vector<1xf32>
    %24 = vector.shape_cast %23 : vector<1xf32> to vector<1x1x1xf32>
    %25 = vector.extract %24[0, 0, 0] : f32 from vector<1x1x1xf32>
    %cst_13 = arith.constant -6.250000e-02 : f32
    %26 = arith.mulf %cst_13, %25 : f32
    %c0_14 = arith.constant 0 : index
    %27 = memref.load %arg5[%c0_14] : memref<1xf32, #tpu.memory_space<smem>>
    memref.store %26, %arg5[%c0_14] : memref<1xf32, #tpu.memory_space<smem>>
    %cst_15 = arith.constant 0.000000e+00 : f32
    %28 = vector.broadcast %cst_15 : f32 to vector<8x32xf32>
    %29 = tpu.concatenate %2, %7, %15, %28 in 1 : vector<8x32xf32>, vector<8x32xf32>, vector<8x32xf32>, vector<8x32xf32> -> vector<8x128xf32>
    %c0_16 = arith.constant 0 : index
    %c0_17 = arith.constant 0 : index
    %30 = vector.load %arg4[%c0_16, %c0_17] : memref<8x128xf32, #tpu.memory_space<vmem>>, vector<8x128xf32>
    tpu.vector_store %arg4[%c0_16, %c0_17], %29 {strides = array<i32>} : memref<8x128xf32, #tpu.memory_space<vmem>>, vector<8x128xf32>,
    return
  }
}

</mosaic_0001>

<llo_original>
// kernel: tpu_custom_call.1
$region0: #{tpu_custom_call.1}
  #allocation0 [shape = 'u32[]', space=smem, size = 0x4, offset = 0x4, fixed_abs, tag = 'smem constant byte address 0x4 - core index']
  #allocation1 [shape = 'u32[144,128]{1,0:T(1,128)}', space=vmem, size = 0x12000, scoped, tag = 'internal scratch']
  %s0 = inlined_call_operand.vmem [shape: f32[8,65], index: 0, kind: input, shape index: {}]
  %s1 = inlined_call_operand.vmem [shape: f32[65,32], index: 1, kind: input, shape index: {}]
  %s2 = inlined_call_operand.vmem [shape: f32[65,32], index: 2, kind: input, shape index: {}]
  %s3 = inlined_call_operand.vmem [shape: f32[8,32], index: 3, kind: input, shape index: {}]
  %s4 = inlined_call_operand.hbm [shape: f32[8,128], index: 4, kind: output, shape index: {0}]
  %s5 = inlined_call_operand.hbm [shape: f32[1], index: 5, kind: output, shape index: {1}]
  %6 = xla_tuple %s4, %s5
  %s7 = sld [smem:[#allocation0]]
  $region34: #{tpu_custom_call.1} parent=0
    _
  %s9 = ssub.s32 1, %s7
  %s10 = scalar_select 0, %s9, %s7
  $region1: #{tpu_custom_call.1} parent=0
    #allocation2 [shape = 'u8[4096]{0}', space=vmem, size = 0x1000, scoped, tag = 'output window, operand 0, single buffered']
    #allocation3 [shape = 's32[1]{0}', space=sflag, size = 0x4, scoped, tag = 'scoped memory for tpu_custom_call.1']
    #allocation4 [shape = 's32[1]{0}', space=sflag, size = 0x4, scoped, tag = 'scoped memory for tpu_custom_call.1']
    #allocation5 [shape = 'u8[512]{0}', space=smem, size = 0x200, scoped, tag = 'output window, operand 1, single buffered']
    %11 = vsyncpa [#allocation3], 0
    %12 = vsyncpa [#allocation4], 0
    // Predicated region
    $region2: #{tpu_custom_call.1} parent=1 // pred_check
      _
    $region3: #{tpu_custom_call.1} parent=1 // pred_check_branch
      %14 = sbr.rel (0) target = $region5
    $region4: #{tpu_custom_call.1} parent=1 // pred_region
      _
    $region5: #{tpu_custom_call.1} parent=1 // pred_fallthru
      _
    // Predicated region
    $region6: #{tpu_custom_call.1} parent=1 // pred_check
      _
    $region7: #{tpu_custom_call.1} parent=1 // pred_check_branch
      %16 = sbr.rel (0) target = $region9
    $region8: #{tpu_custom_call.1} parent=1 // pred_region
      _
    $region9: #{tpu_custom_call.1} parent=1 // pred_fallthru
      _
    // Predicated region
    $region10: #{tpu_custom_call.1} parent=1 // pred_check
      _
    $region11: #{tpu_custom_call.1} parent=1 // pred_check_branch
      %18 = sbr.rel (0) target = $region13
    $region12: #{tpu_custom_call.1} parent=1 // pred_region
      _
    $region13: #{tpu_custom_call.1} parent=1 // pred_fallthru
      _
    // Predicated region
    $region14: #{tpu_custom_call.1} parent=1 // pred_check
      _
    $region15: #{tpu_custom_call.1} parent=1 // pred_check_branch
      %20 = sbr.rel (0) target = $region17
    $region16: #{tpu_custom_call.1} parent=1 // pred_region
      _
    $region17: #{tpu_custom_call.1} parent=1 // pred_fallthru
      _
    %v21 = vld [vmem:[%s0] sm:$0xff]
    %v22 = vld [vmem:[%s1] sm:$0xff]
    %v23 = vld [vmem:[%s1 + $0x8] sm:$0xff]
    %v24 = vld [vmem:[%s1 + $0x10] sm:$0xff]
    %v25 = vld [vmem:[%s1 + $0x18] sm:$0xff]
    %v26 = vld [vmem:[%s1 + $0x20] sm:$0xff]
    %v27 = vld [vmem:[%s1 + $0x28] sm:$0xff]
    %v28 = vld [vmem:[%s1 + $0x30] sm:$0xff]
    %v29 = vld [vmem:[%s1 + $0x38] sm:$0xff]
    %v30 = vld [vmem:[%s1 + $0x40] sm:$0x1]
    %vm31 = vcmask 531456
    %v33 = vsel %vm31, %v21, 0
    %vm35 = vcmask 1040384
    %v37 = vsel %vm35, %v30, 0
    %39 = vmatprep.subr.mxu0 0.0
    %40 = vmatpush1.msra.mxu0 %v22
    %41 = vmatprep.subr.mxu0 0.0
    %42 = vmatpush1.msra.mxu0 %v23
    %43 = vmatprep.subr.mxu0 0.0
    %44 = vmatpush1.msra.mxu0 %v24
    %45 = vmatprep.subr.mxu0 0.0
    %46 = vmatpush1.msra.mxu0 %v25
    %47 = vmatprep.subr.mxu0 0.0
    %48 = vmatpush1.msra.mxu0 %v26
    %49 = vmatprep.subr.mxu0 0.0
    %50 = vmatpush1.msra.mxu0 %v27
    %51 = vmatprep.subr.mxu0 0.0
    %52 = vmatpush1.msra.mxu0 %v28
    %53 = vmatprep.subr.mxu0 0.0
    %54 = vmatpush1.msra.mxu0 %v29
    %55 = vmatprep.subr.mxu0 0.0
    %56 = vmatpush1.msra.mxu0 %v37
    %57 = vmatprep.subr.mxu0 0.0
    %58 = vmatpush1.msra.mxu0 0.0
    %59 = vmatprep.subr.mxu0 0.0
    %60 = vmatpush1.msra.mxu0 0.0
    %61 = vmatprep.subr.mxu0 0.0
    %62 = vmatpush1.msra.mxu0 0.0
    %63 = vmatprep.subr.mxu0 0.0
    %64 = vmatpush1.msra.mxu0 0.0
    %65 = vmatprep.subr.mxu0 0.0
    %66 = vmatpush1.msra.mxu0 0.0
    %67 = vmatprep.subr.mxu0 0.0
    %68 = vmatpush1.msra.mxu0 0.0
    %69 = vmatprep.subr.mxu0 0.0
    %70 = vmatpush1.msra.mxu0 0.0
    %71 = vmatprep.subr.mxu0 0.0
    %72 = vmatpush1.msra.mxu0 0.0
    %73 = vmatprep.subr.mxu0 0.0
    %74 = vmatpush1.msra.mxu0 0.0
    %75 = vmatprep.subr.mxu0 0.0
    %76 = vmatpush1.msra.mxu0 0.0
    %77 = vmatprep.subr.mxu0 0.0
    %78 = vmatpush1.msra.mxu0 0.0
    %79 = vmatprep.subr.mxu0 0.0
    %80 = vmatpush1.msra.mxu0 0.0
    %81 = vmatprep.subr.mxu0 0.0
    %82 = vmatpush1.msra.mxu0 0.0
    %83 = vmatprep.subr.mxu0 0.0
    %84 = vmatpush1.msra.mxu0 0.0
    %85 = vmatprep.subr.mxu0 0.0
    %86 = vmatpush1.msra.mxu0 0.0
    %87 = vmatprep.subr.mxu0 0.0
    %88 = vmatpush1.msra.mxu0 0.0
    %89 = vmatprep.subr.mxu0 0.0
    %90 = vmatpush1.msra.mxu0 0.0
    %91 = vmatprep.subr.mxu0 0.0
    %92 = vmatpush1.msra.mxu0 0.0
    %93 = vmatprep.subr.mxu0 0.0
    %94 = vmatpush1.msra.mxu0 0.0
    %95 = vmatprep.subr.mxu0 0.0
    %96 = vmatpush1.msra.mxu0 0.0
    %97 = vmatprep.subr.mxu0 0.0
    %98 = vmatpush1.msra.mxu0 0.0
    %99 = vmatprep.subr.mxu0 0.0
    %100 = vmatpush1.msra.mxu0 0.0
    %101 = vmatprep.subr.mxu0 0.0
    %102 = vmatpush1.msra.mxu0 0.0
    %103 = vmatprep.mubr.f32.mxu0 0.0
    %104 = vmatmul.mubr.f32.gmra.mrb[0].mxu0 %v33
    %v105 = vpop.f32.mrb[0].mxu0
    %v106 = vadd.f32 0.0, %v105
    %v107 = vpop.f32.mrb[0].mxu0
    %108 = vdwg.mxu0
    %v109 = vld [vmem:[%s2] sm:$0xff]
    %v110 = vld [vmem:[%s2 + $0x8] sm:$0xff]
    %v111 = vld [vmem:[%s2 + $0x10] sm:$0xff]
    %v112 = vld [vmem:[%s2 + $0x18] sm:$0xff]
    %v113 = vld [vmem:[%s2 + $0x20] sm:$0xff]
    %v114 = vld [vmem:[%s2 + $0x28] sm:$0xff]
    %v115 = vld [vmem:[%s2 + $0x30] sm:$0xff]
    %v116 = vld [vmem:[%s2 + $0x38] sm:$0xff]
    %v117 = vld [vmem:[%s2 + $0x40] sm:$0x1]
    %v119 = vsel %vm35, %v117, 0
    %121 = vmatprep.subr.mxu0 0.0
    %122 = vmatpush1.msra.mxu0 %v109
    %123 = vmatprep.subr.mxu0 0.0
    %124 = vmatpush1.msra.mxu0 %v110
    %125 = vmatprep.subr.mxu0 0.0
    %126 = vmatpush1.msra.mxu0 %v111
    %127 = vmatprep.subr.mxu0 0.0
    %128 = vmatpush1.msra.mxu0 %v112
    %129 = vmatprep.subr.mxu0 0.0
    %130 = vmatpush1.msra.mxu0 %v113
    %131 = vmatprep.subr.mxu0 0.0
    %132 = vmatpush1.msra.mxu0 %v114
    %133 = vmatprep.subr.mxu0 0.0
    %134 = vmatpush1.msra.mxu0 %v115
    %135 = vmatprep.subr.mxu0 0.0
    %136 = vmatpush1.msra.mxu0 %v116
    %137 = vmatprep.subr.mxu0 0.0
    %138 = vmatpush1.msra.mxu0 %v119
    %139 = vmatprep.subr.mxu0 0.0
    %140 = vmatpush1.msra.mxu0 0.0
    %141 = vmatprep.subr.mxu0 0.0
    %142 = vmatpush1.msra.mxu0 0.0
    %143 = vmatprep.subr.mxu0 0.0
    %144 = vmatpush1.msra.mxu0 0.0
    %145 = vmatprep.subr.mxu0 0.0
    %146 = vmatpush1.msra.mxu0 0.0
    %147 = vmatprep.subr.mxu0 0.0
    %148 = vmatpush1.msra.mxu0 0.0
    %149 = vmatprep.subr.mxu0 0.0
    %150 = vmatpush1.msra.mxu0 0.0
    %151 = vmatprep.subr.mxu0 0.0
    %152 = vmatpush1.msra.mxu0 0.0
    %153 = vmatprep.subr.mxu0 0.0
    %154 = vmatpush1.msra.mxu0 0.0
    %155 = vmatprep.subr.mxu0 0.0
    %156 = vmatpush1.msra.mxu0 0.0
    %157 = vmatprep.subr.mxu0 0.0
    %158 = vmatpush1.msra.mxu0 0.0
    %159 = vmatprep.subr.mxu0 0.0
    %160 = vmatpush1.msra.mxu0 0.0
    %161 = vmatprep.subr.mxu0 0.0
    %162 = vmatpush1.msra.mxu0 0.0
    %163 = vmatprep.subr.mxu0 0.0
    %164 = vmatpush1.msra.mxu0 0.0
    %165 = vmatprep.subr.mxu0 0.0
    %166 = vmatpush1.msra.mxu0 0.0
    %167 = vmatprep.subr.mxu0 0.0
    %168 = vmatpush1.msra.mxu0 0.0
    %169 = vmatprep.subr.mxu0 0.0
    %170 = vmatpush1.msra.mxu0 0.0
    %171 = vmatprep.subr.mxu0 0.0
    %172 = vmatpush1.msra.mxu0 0.0
    %173 = vmatprep.subr.mxu0 0.0
    %174 = vmatpush1.msra.mxu0 0.0
    %175 = vmatprep.subr.mxu0 0.0
    %176 = vmatpush1.msra.mxu0 0.0
    %177 = vmatprep.subr.mxu0 0.0
    %178 = vmatpush1.msra.mxu0 0.0
    %179 = vmatprep.subr.mxu0 0.0
    %180 = vmatpush1.msra.mxu0 0.0
    %181 = vmatprep.subr.mxu0 0.0
    %182 = vmatpush1.msra.mxu0 0.0
    %183 = vmatprep.subr.mxu0 0.0
    %184 = vmatpush1.msra.mxu0 0.0
    %185 = vmatprep.mubr.f32.mxu0 0.0
    %186 = vmatmul.mubr.f32.gmra.mrb[0].mxu0 %v33
    %v187 = vpop.f32.mrb[0].mxu0
    %v188 = vadd.f32 0.0, %v187
    %v189 = vpop.f32.mrb[0].mxu0
    %190 = vdwg.mxu0
    %v191 = vand.u32 2147483647, %v188
    %v192 = vsub.f32 0.0, %v191
    %v193 = vmul.f32 %v192, 0.5
    %v194 = vmul.f32 %v193, 1.442695
    %v195 = vpow.pop %v194
    %v196 = vld [vmem:[%s3] sm:$0xff]
    %v197 = vmul.f32 %v196, 0.1
    %v198 = vmul.f32 %v195, %v197
    %v199 = vadd.f32 %v106, %v198
    %v200 = vadd.f32 %v192, 1.0
    %v201 = vmul.f32 %v106, %v106
    %v202 = vsub.f32 %v200, %v201
    %v203 = vmul.f32 %v195, %v195
    %v204 = vsub.f32 %v202, %v203
    %vm205 = vcmask 261120
    %v206 = vsel %vm205, %v204, 0.0
    %207 = vadd.xlane.f32.xlu0 %v206
    %v208 = vpop.xlane.xlu0 %207
    %v209 = vrot.slane %v208, 4
    %v210 = vadd.f32 %v208, %v209
    %v211 = vrot.slane %v210, 2
    %v212 = vadd.f32 %v210, %v211
    %v213 = vrot.slane %v212, 1
    %v214 = vadd.f32 %v212, %v213
    %s215 = vtos %v214
    %s216 = smul.f32 %s215, -0.0625
    %s217 = scalar_lea.smem [#allocation5], 0
    %218 = sst [smem:[%s217]] %s216
    %220 = vrot.lane.b32.xlu0 %v192, 32
    %v221 = vpop.permute.xlu0 %220
    %224 = vrot.lane.b32.xlu0 %v199, 64
    %v225 = vpop.permute.xlu0 %224
    %v227 = vsel %vm205, %v106, %v221
    %vm228 = vcmask 523264
    %v229 = vsel %vm228, %v227, %v225
    %vm230 = vcmask 785408
    %v231 = vsel %vm230, %v229, 0.0
    %232 = vst [vmem:[#allocation2] sm:$0xff] %v231
    // Predicated region
    $region18: #{tpu_custom_call.1} parent=1 // pred_check
      _
    $region19: #{tpu_custom_call.1} parent=1 // pred_check_branch
      %234 = sbr.rel (0) target = $region21
    $region20: #{tpu_custom_call.1} parent=1 // pred_region
      %s236 = ssub.s32 128, 128
      %237 = vsyncadd [#allocation3], %s236
      %s239 = sshll.u32 [#allocation2], 4
      %s240 = int_to_ptr.vmem [resolvable:$true] %s239
      %242 = dma.vmem_to_hbm [thread:$0]  %s240, 128, %s4, [#allocation3]
    $region21: #{tpu_custom_call.1} parent=1 // pred_fallthru
      _
    // Predicated region
    $region22: #{tpu_custom_call.1} parent=1 // pred_check
      _
    $region23: #{tpu_custom_call.1} parent=1 // pred_check_branch
      %244 = sbr.rel (0) target = $region25
    $region24: #{tpu_custom_call.1} parent=1 // pred_region
      %s246 = ssub.s32 16, 16
      %247 = vsyncadd [#allocation4], %s246
      %250 = dma.smem_to_hbm [#allocation5], 16, %s5, [#allocation4]
    $region25: #{tpu_custom_call.1} parent=1 // pred_fallthru
      _
    // Predicated region
    $region26: #{tpu_custom_call.1} parent=1 // pred_check
      _
    $region27: #{tpu_custom_call.1} parent=1 // pred_check_branch
      %252 = sbr.rel (0) target = $region29
    $region28: #{tpu_custom_call.1} parent=1 // pred_region
      %253 = dma.done [#allocation3], 128
    $region29: #{tpu_custom_call.1} parent=1 // pred_fallthru
      _
    // Predicated region
    $region30: #{tpu_custom_call.1} parent=1 // pred_check
      _
    $region31: #{tpu_custom_call.1} parent=1 // pred_check_branch
      %255 = sbr.rel (0) target = $region33
    $region32: #{tpu_custom_call.1} parent=1 // pred_region
      %256 = dma.done [#allocation4], 16
    $region33: #{tpu_custom_call.1} parent=1 // pred_fallthru
      _
    %257 = sfence
    %258 = vsyncpa [#allocation3], 1
    %259 = vsyncpa [#allocation4], 1

</llo_original>
